<compile_context>
chip_gen: v5e
topology: v5e:2x2
jax: 0.10.0
libtpu: 0.0.40
codegen_flags: <defaults>
</compile_context>

<pallas_src>
import functools

import jax
import jax.numpy as jnp
from jax.experimental import pallas as pl
from jax.experimental.pallas import tpu as pltpu


# ----------------------------------------------------------------------------
# Fused CausalConv1d -> LayerNorm -> GeLU kernel (channels-last).
# ----------------------------------------------------------------------------
def _causal_conv_ln_gelu_kernel(x_ref, halo_ref, w_ref, b_ref, g_ref, bt_ref,
                                o_ref, xwin_ref):
    # x_ref   : (1, TL, C_in)         current L tile, channels-last
    # halo_ref: (1, 1, HALO_A, C_in)  last K-1 rows of previous tile (zeros @ t=0)
    # w_ref   : (K*C_in, C_out)       stacked conv taps (tap-major)
    # b_ref   : (1, C_out)            conv bias
    # g_ref   : (1, C_out)            LayerNorm gamma
    # bt_ref  : (1, C_out)            LayerNorm beta
    # o_ref   : (1, TL, C_out)
    # xwin_ref: (TL + 8, C_in)        VMEM staging window (tile + causal halo)
    TL = x_ref.shape[1]
    C_in = x_ref.shape[2]
    K = w_ref.shape[0] // C_in
    HALO = K - 1

    if K > 1:
        # Stage the tile at sublane offset 8 (aligned bulk store) and the
        # causal halo directly in front of it.
        xwin_ref[pl.ds(8, TL), :] = x_ref[0]
        xwin_ref[pl.ds(8 - HALO, HALO), :] = halo_ref[0, 0]
        # im2col: one lane-dim concat -> a single deep MXU contraction
        # instead of K narrow (TL, C_in) x (C_in, C_out) matmuls.
        taps = [xwin_ref[pl.ds(8 - HALO + k, TL), :] for k in range(K)]
        xcat = jnp.concatenate(taps, axis=1)                 # (TL, K*C_in)
    else:
        xcat = x_ref[0]

    acc = jnp.dot(xcat, w_ref[...], preferred_element_type=jnp.float32)
    acc = acc + b_ref[...].astype(jnp.float32)

    # LayerNorm over channels (PyTorch default eps = 1e-5).
    mu = jnp.mean(acc, axis=-1, keepdims=True)
    xc = acc - mu
    var = jnp.mean(xc * xc, axis=-1, keepdims=True)
    h = xc * jax.lax.rsqrt(var + 1e-5)
    h = h * g_ref[...].astype(jnp.float32) + bt_ref[...].astype(jnp.float32)

    # GeLU.
    # TODO(synk): PyTorch F.gelu defaults to the exact erf form; the tanh
    # approximation is used for portable Mosaic lowering (EUP tanh).
    c = 0.7978845608028654  # sqrt(2/pi)
    h = 0.5 * h * (1.0 + jnp.tanh(c * (h + 0.044715 * (h * h * h))))

    o_ref[0] = h.astype(o_ref.dtype)


def causal_conv_ln_gelu(x_blc, conv_w, conv_b, ln_g, ln_b, *, tl=512):
    """Fused causal Conv1d + LayerNorm + GeLU, channels-last.

    x_blc : (B, L, C_in)
    conv_w: (C_out, C_in, K)   (PyTorch Conv1d weight layout)
    conv_b, ln_g, ln_b: (C_out,)
    Returns (B, L, C_out).
    """
    B, L, C_in = x_blc.shape
    C_out, c_in_w, K = conv_w.shape
    assert c_in_w == C_in
    assert 1 <= K and K - 1 <= 8, "kernel_size must be in [1, 9]"

    # L tiling: multiple of 8 sublanes, <= (padded) L.
    tl = int(tl)
    tl = min(tl, pl.cdiv(L, 8) * 8)
    tl = max(8, (tl // 8) * 8)
    Lp = pl.cdiv(L, tl) * tl
    x_p = x_blc if Lp == L else jnp.pad(x_blc, ((0, 0), (0, Lp - L), (0, 0)))
    NT = Lp // tl

    # Per-tile causal halo: last K-1 rows of the previous tile (zeros for t=0).
    # This replaces a full-tensor left-pad of the activations in HBM.
    HALO_A = max(K - 1, 1)
    if K > 1:
        x_tiles = x_p.reshape(B, NT, tl, C_in)
        tails = x_tiles[:, :NT - 1, tl - (K - 1):, :]        # (B, NT-1, K-1, C_in)
        halos = jnp.concatenate(
            [jnp.zeros((B, 1, K - 1, C_in), x_p.dtype), tails], axis=1)
    else:
        halos = jnp.zeros((B, NT, 1, C_in), x_p.dtype)

    # Stack taps so the conv is one deep matmul: w_cat[k*C_in + c, o] = w[o, c, k].
    w_cat = jnp.transpose(conv_w, (2, 1, 0)).reshape(K * C_in, C_out)
    b2 = conv_b.reshape(1, C_out)
    g2 = ln_g.reshape(1, C_out)
    bt2 = ln_b.reshape(1, C_out)

    out = pl.pallas_call(
        _causal_conv_ln_gelu_kernel,
        out_shape=jax.ShapeDtypeStruct((B, Lp, C_out), x_blc.dtype),
        grid_spec=pltpu.PrefetchScalarGridSpec(
            num_scalar_prefetch=0,
            grid=(B, NT),
            in_specs=[
                pl.BlockSpec((1, tl, C_in), lambda b, t: (b, t, 0)),
                pl.BlockSpec((1, 1, HALO_A, C_in), lambda b, t: (b, t, 0, 0)),
                pl.BlockSpec((K * C_in, C_out), lambda b, t: (0, 0)),
                pl.BlockSpec((1, C_out), lambda b, t: (0, 0)),
                pl.BlockSpec((1, C_out), lambda b, t: (0, 0)),
                pl.BlockSpec((1, C_out), lambda b, t: (0, 0)),
            ],
            out_specs=pl.BlockSpec((1, tl, C_out), lambda b, t: (b, t, 0)),
            scratch_shapes=[pltpu.VMEM((tl + 8, C_in), x_blc.dtype)],
        ),
        compiler_params=pltpu.CompilerParams(
            dimension_semantics=("parallel", "parallel")),
        cost_estimate=pl.CostEstimate(
            flops=2 * B * Lp * K * C_in * C_out,
            transcendentals=B * Lp * C_out,
            bytes_accessed=4 * (B * Lp * C_in + B * Lp * C_out
                                + K * C_in * C_out)),
    )(x_p, halos, w_cat, b2, g2, bt2)

    return out if Lp == L else out[:, :L, :]


# ----------------------------------------------------------------------------
# Final Linear (vocab projection) kernel, on flattened (B*L, F) rows.
# ----------------------------------------------------------------------------
def _linear_kernel(h_ref, w_ref, b_ref, o_ref):
    # h_ref: (TM, F); w_ref: (F, TV); b_ref: (1, TV); o_ref: (TM, TV)
    acc = jnp.dot(h_ref[...], w_ref[...], preferred_element_type=jnp.float32)
    o_ref[...] = (acc + b_ref[...].astype(jnp.float32)).astype(o_ref.dtype)


def linear_blf(h_blf, fc_w, fc_b, *, tm=512, tv=1024):
    """logits = h @ fc_w.T + fc_b ; h: (B, L, F), fc_w: (V, F), fc_b: (V,)."""
    B, L, F = h_blf.shape
    V = fc_w.shape[0]
    M = B * L

    # Flatten batch/sequence: bigger sublane-dense row tiles, fewer grid steps.
    h2 = h_blf.reshape(M, F)
    tm = int(tm)
    tm = min(tm, pl.cdiv(M, 8) * 8)
    tm = max(8, (tm // 8) * 8)
    Mp = pl.cdiv(M, tm) * tm
    if Mp != M:
        h2 = jnp.pad(h2, ((0, Mp - M), (0, 0)))

    # Vocab tile: full V if small, else a lane-dense multiple of 128.
    if V < 128:
        tv = V
    else:
        tv = max(128, (min(int(tv), V) // 128) * 128)
    Vp = pl.cdiv(V, tv) * tv
    w_fv = jnp.transpose(fc_w, (1, 0))                        # (F, V)
    b_v = fc_b
    if Vp != V:
        w_fv = jnp.pad(w_fv, ((0, 0), (0, Vp - V)))
        b_v = jnp.pad(b_v, ((0, Vp - V),))
    b2 = b_v.reshape(1, Vp)

    NM, NV = Mp // tm, Vp // tv
    # Grid order (v, m): the weight/bias block index depends only on the outer
    # axis, so each (F, TV) weight slab is DMA'd exactly once per call; only
    # the small (TM, F) activation tile is re-streamed across v.
    out = pl.pallas_call(
        _linear_kernel,
        out_shape=jax.ShapeDtypeStruct((Mp, Vp), h_blf.dtype),
        grid_spec=pltpu.PrefetchScalarGridSpec(
            num_scalar_prefetch=0,
            grid=(NV, NM),
            in_specs=[
                pl.BlockSpec((tm, F), lambda v, m: (m, 0)),
                pl.BlockSpec((F, tv), lambda v, m: (0, v)),
                pl.BlockSpec((1, tv), lambda v, m: (0, v)),
            ],
            out_specs=pl.BlockSpec((tm, tv), lambda v, m: (m, v)),
        ),
        compiler_params=pltpu.CompilerParams(
            dimension_semantics=("parallel", "parallel")),
        cost_estimate=pl.CostEstimate(
            flops=2 * Mp * F * Vp,
            transcendentals=0,
            bytes_accessed=4 * (NV * Mp * F + F * Vp + Mp * Vp)),
    )(h2, w_fv, b2)

    if Mp != M or Vp != V:
        out = out[:M, :V]
    return out.reshape(B, L, V)


# ----------------------------------------------------------------------------
# Full model forward (inference).
# ----------------------------------------------------------------------------
def cnn_lm_forward(params, input_ids, *, tl=512):
    """CNNLanguageModel.forward (eval mode). input_ids: (B, L) int32."""
    # TODO(synk): embedding row gather is data-dependent (no clean dense
    # BlockSpec equivalent); left to XLA's native gather.
    emb = jnp.take(params["emb"], input_ids, axis=0)          # (B, L, D)

    # conv1 -> LayerNorm1 -> GeLU  (dropout = identity at inference)
    h = causal_conv_ln_gelu(emb, params["conv1_w"], params["conv1_b"],
                            params["ln1_g"], params["ln1_b"], tl=tl)
    # conv2 -> LayerNorm2 -> GeLU  (dropout = identity at inference)
    h = causal_conv_ln_gelu(h, params["conv2_w"], params["conv2_b"],
                            params["ln2_g"], params["ln2_b"], tl=tl)
    # final vocab projection
    return linear_blf(h, params["fc_w"], params["fc_b"])


# ----------------------------------------------------------------------------
# Pure-JAX reference (same math, same GeLU approximation).
# ----------------------------------------------------------------------------
def _gelu_tanh(x):
    c = 0.7978845608028654
    return 0.5 * x * (1.0 + jnp.tanh(c * (x + 0.044715 * x * x * x)))


def _ref_forward(params, input_ids):
    hp = jax.lax.Precision.HIGHEST

    def causal_conv(x_blc, w, b):                             # w: (Cout, Cin, K)
        B, L, _ = x_blc.shape
        Cout, _, K = w.shape
        xp = jnp.pad(x_blc, ((0, 0), (K - 1, 0), (0, 0)))
        out = jnp.zeros((B, L, Cout), jnp.float32)
        for k in range(K):
            out = out + jnp.einsum("blc,oc->blo",
                                   xp[:, k:k + L, :].astype(jnp.float32),
                                   w[:, :, k].astype(jnp.float32),
                                   precision=hp)
        return out + b.astype(jnp.float32)

    def ln(x, g, bta):
        mu = jnp.mean(x, axis=-1, keepdims=True)
        var = jnp.mean((x - mu) ** 2, axis=-1, keepdims=True)
        return (x - mu) * jax.lax.rsqrt(var + 1e-5) * g + bta

    emb = jnp.take(params["emb"], input_ids, axis=0)
    h = _gelu_tanh(ln(causal_conv(emb, params["conv1_w"], params["conv1_b"]),
                      params["ln1_g"], params["ln1_b"]))
    h = _gelu_tanh(ln(causal_conv(h, params["conv2_w"], params["conv2_b"]),
                      params["ln2_g"], params["ln2_b"]))
    logits = jnp.einsum("blf,vf->blv", h, params["fc_w"].astype(jnp.float32),
                        precision=hp) + params["fc_b"].astype(jnp.float32)
    return logits


if __name__ == "__main__":
    # Small test consistent with the module defaults
    # (embed_dim=128, num_filters=128, kernel_size=3), shrunk seq/vocab/batch.
    B, L = 2, 64
    V, D, F, K = 256, 128, 128, 3

    key = jax.random.PRNGKey(0)
    ks = jax.random.split(key, 11)
    params = {
        "emb":     0.02 * jax.random.normal(ks[0], (V, D), jnp.float32),
        "conv1_w": 0.05 * jax.random.normal(ks[1], (F, D, K), jnp.float32),
        "conv1_b": 0.02 * jax.random.normal(ks[2], (F,), jnp.float32),
        "ln1_g":   1.0 + 0.05 * jax.random.normal(ks[3], (F,), jnp.float32),
        "ln1_b":   0.02 * jax.random.normal(ks[4], (F,), jnp.float32),
        "conv2_w": 0.05 * jax.random.normal(ks[5], (F, F, K), jnp.float32),
        "conv2_b": 0.02 * jax.random.normal(ks[6], (F,), jnp.float32),
        "ln2_g":   1.0 + 0.05 * jax.random.normal(ks[7], (F,), jnp.float32),
        "ln2_b":   0.02 * jax.random.normal(ks[8], (F,), jnp.float32),
        "fc_w":    0.02 * jax.random.normal(ks[9], (V, F), jnp.float32),
        "fc_b":    jnp.zeros((V,), jnp.float32),
    }
    input_ids = jax.random.randint(ks[10], (B, L), 0, V, dtype=jnp.int32)

    # tl=16 splits the 64-token sequence into 4 tiles so the cross-tile causal
    # halo path is exercised; production default is tl=512.
    fwd = jax.jit(functools.partial(cnn_lm_forward, tl=16))
    logits = jax.block_until_ready(fwd(params, input_ids))

    ref = _ref_forward(params, input_ids)
    assert logits.shape == (B, L, V), logits.shape
    max_err = float(jnp.max(jnp.abs(logits - ref)))
    assert max_err < 2e-3, f"mismatch vs reference: max abs err {max_err}"

    print("KERNEL_OK")
</pallas_src>

<mosaic_0001>
module attributes {stable_mosaic.version = 11 : i64} {
  func.func @_causal_conv_ln_gelu_kernel(%arg0: i32, %arg1: i32, %arg2: memref<1x16x128xf32, #tpu.memory_space<vmem>>, %arg3: memref<1x1x2x128xf32, #tpu.memory_space<vmem>>, %arg4: memref<384x128xf32, #tpu.memory_space<vmem>>, %arg5: memref<1x128xf32, #tpu.memory_space<vmem>>, %arg6: memref<1x128xf32, #tpu.memory_space<vmem>>, %arg7: memref<1x128xf32, #tpu.memory_space<vmem>>, %arg8: memref<1x16x128xf32, #tpu.memory_space<vmem>>, %arg9: memref<24x128xf32, #tpu.memory_space<vmem>>) attributes {dimension_semantics = [#tpu.dimension_semantics<parallel>, #tpu.dimension_semantics<parallel>], iteration_bounds = array<i64: 2, 4>, scalar_prefetch = 0 : i64, scratch_operands = 1 : i64, tpu.core_type = #tpu.core_type<tc>, window_params = [{transform_indices = @transform_0, window_bounds = array<i64: 1, 16, 128>}, {transform_indices = @transform_1, window_bounds = array<i64: 1, 1, 2, 128>}, {pipeline_mode = #tpu.pipeline_mode<synchronous>, transform_indices = @transform_2, window_bounds = array<i64: 384, 128>}, {pipeline_mode = #tpu.pipeline_mode<synchronous>, transform_indices = @transform_3, window_bounds = array<i64: 1, 128>}, {pipeline_mode = #tpu.pipeline_mode<synchronous>, transform_indices = @transform_4, window_bounds = array<i64: 1, 128>}, {pipeline_mode = #tpu.pipeline_mode<synchronous>, transform_indices = @transform_5, window_bounds = array<i64: 1, 128>}, {transform_indices = @transform_6, window_bounds = array<i64: 1, 16, 128>}]} {
    %c0 = arith.constant 0 : index
    %c0_0 = arith.constant 0 : index
    %c0_1 = arith.constant 0 : index
    %0 = vector.load %arg2[%c0, %c0_0, %c0_1] : memref<1x16x128xf32, #tpu.memory_space<vmem>>, vector<1x16x128xf32>
    %1 = vector.shape_cast %0 : vector<1x16x128xf32> to vector<16x128xf32>
    %c8 = arith.constant 8 : index
    %c0_2 = arith.constant 0 : index
    %2 = vector.load %arg9[%c8, %c0_2] : memref<24x128xf32, #tpu.memory_space<vmem>>, vector<16x128xf32>
    tpu.vector_store %arg9[%c8, %c0_2], %1 {strides = array<i32>} : memref<24x128xf32, #tpu.memory_space<vmem>>, vector<16x128xf32>,
    %c0_3 = arith.constant 0 : index
    %c0_4 = arith.constant 0 : index
    %c0_5 = arith.constant 0 : index
    %c0_6 = arith.constant 0 : index
    %3 = vector.load %arg3[%c0_3, %c0_4, %c0_5, %c0_6] : memref<1x1x2x128xf32, #tpu.memory_space<vmem>>, vector<1x1x2x128xf32>
    %4 = vector.shape_cast %3 : vector<1x1x2x128xf32> to vector<2x128xf32>
    %c6 = arith.constant 6 : index
    %c0_7 = arith.constant 0 : index
    %5 = vector.load %arg9[%c6, %c0_7] : memref<24x128xf32, #tpu.memory_space<vmem>>, vector<2x128xf32>
    tpu.vector_store %arg9[%c6, %c0_7], %4 {strides = array<i32>} : memref<24x128xf32, #tpu.memory_space<vmem>>, vector<2x128xf32>,
    %c6_8 = arith.constant 6 : index
    %c0_9 = arith.constant 0 : index
    %6 = vector.load %arg9[%c6_8, %c0_9] : memref<24x128xf32, #tpu.memory_space<vmem>>, vector<16x128xf32>
    %c7 = arith.constant 7 : index
    %c0_10 = arith.constant 0 : index
    %7 = vector.load %arg9[%c7, %c0_10] : memref<24x128xf32, #tpu.memory_space<vmem>>, vector<16x128xf32>
    %c8_11 = arith.constant 8 : index
    %c0_12 = arith.constant 0 : index
    %8 = vector.load %arg9[%c8_11, %c0_12] : memref<24x128xf32, #tpu.memory_space<vmem>>, vector<16x128xf32>
    %9 = tpu.concatenate %6, %7, %8 in 1 : vector<16x128xf32>, vector<16x128xf32>, vector<16x128xf32> -> vector<16x384xf32>
    %c0_13 = arith.constant 0 : index
    %c0_14 = arith.constant 0 : index
    %10 = vector.load %arg4[%c0_13, %c0_14] : memref<384x128xf32, #tpu.memory_space<vmem>>, vector<384x128xf32>
    %cst = arith.constant dense<0.000000e+00> : vector<16x128xf32>
    %11 = tpu.matmul %9, %10, %cst {dimension_numbers = #tpu.dot_dimension_numbers<[1], [0], [0], [1], [0, 0, 1, 1], [], []>} : vector<16x384xf32>, vector<384x128xf32>, vector<16x128xf32> -> vector<16x128xf32>
    %c0_15 = arith.constant 0 : index
    %c0_16 = arith.constant 0 : index
    %12 = vector.load %arg5[%c0_15, %c0_16] : memref<1x128xf32, #tpu.memory_space<vmem>>, vector<1x128xf32>
    %13 = vector.broadcast %12 : vector<1x128xf32> to vector<16x128xf32>
    %14 = arith.addf %11, %13 : vector<16x128xf32>
    %cst_17 = arith.constant dense<0.000000e+00> : vector<16xf32>
    %15 = vector.multi_reduction <add>, %14, %cst_17 [1] : vector<16x128xf32> to vector<16xf32>
    %16 = vector.shape_cast %15 : vector<16xf32> to vector<16x1xf32>
    %cst_18 = arith.constant 1.280000e+02 : f32
    %17 = vector.broadcast %cst_18 : f32 to vector<16x1xf32>
    %18 = arith.divf %16, %17 : vector<16x1xf32>
    %19 = vector.broadcast %18 : vector<16x1xf32> to vector<16x128xf32>
    %20 = arith.subf %14, %19 : vector<16x128xf32>
    %21 = arith.mulf %20, %20 : vector<16x128xf32>
    %cst_19 = arith.constant dense<0.000000e+00> : vector<16xf32>
    %22 = vector.multi_reduction <add>, %21, %cst_19 [1] : vector<16x128xf32> to vector<16xf32>
    %23 = vector.shape_cast %22 : vector<16xf32> to vector<16x1xf32>
    %cst_20 = arith.constant 1.280000e+02 : f32
    %24 = vector.broadcast %cst_20 : f32 to vector<16x1xf32>
    %25 = arith.divf %23, %24 : vector<16x1xf32>
    %cst_21 = arith.constant 9.99999974E-6 : f32
    %26 = vector.broadcast %cst_21 : f32 to vector<16x1xf32>
    %27 = arith.addf %25, %26 : vector<16x1xf32>
    %28 = math.rsqrt %27 : vector<16x1xf32>
    %29 = vector.broadcast %28 : vector<16x1xf32> to vector<16x128xf32>
    %30 = arith.mulf %20, %29 : vector<16x128xf32>
    %c0_22 = arith.constant 0 : index
    %c0_23 = arith.constant 0 : index
    %31 = vector.load %arg6[%c0_22, %c0_23] : memref<1x128xf32, #tpu.memory_space<vmem>>, vector<1x128xf32>
    %32 = vector.broadcast %31 : vector<1x128xf32> to vector<16x128xf32>
    %33 = arith.mulf %30, %32 : vector<16x128xf32>
    %c0_24 = arith.constant 0 : index
    %c0_25 = arith.constant 0 : index
    %34 = vector.load %arg7[%c0_24, %c0_25] : memref<1x128xf32, #tpu.memory_space<vmem>>, vector<1x128xf32>
    %35 = vector.broadcast %34 : vector<1x128xf32> to vector<16x128xf32>
    %36 = arith.addf %33, %35 : vector<16x128xf32>
    %cst_26 = arith.constant 5.000000e-01 : f32
    %37 = vector.broadcast %cst_26 : f32 to vector<16x128xf32>
    %38 = arith.mulf %37, %36 : vector<16x128xf32>
    %39 = arith.mulf %36, %36 : vector<16x128xf32>
    %40 = arith.mulf %39, %36 : vector<16x128xf32>
    %cst_27 = arith.constant 4.471500e-02 : f32
    %41 = vector.broadcast %cst_27 : f32 to vector<16x128xf32>
    %42 = arith.mulf %41, %40 : vector<16x128xf32>
    %43 = arith.addf %36, %42 : vector<16x128xf32>
    %cst_28 = arith.constant 0.797884583 : f32
    %44 = vector.broadcast %cst_28 : f32 to vector<16x128xf32>
    %45 = arith.mulf %44, %43 : vector<16x128xf32>
    %46 = math.tanh %45 : vector<16x128xf32>
    %cst_29 = arith.constant 1.000000e+00 : f32
    %47 = vector.broadcast %cst_29 : f32 to vector<16x128xf32>
    %48 = arith.addf %47, %46 : vector<16x128xf32>
    %49 = arith.mulf %38, %48 : vector<16x128xf32>
    %c0_30 = arith.constant 0 : index
    %c0_31 = arith.constant 0 : index
    %c0_32 = arith.constant 0 : index
    %50 = vector.load %arg8[%c0_30, %c0_31, %c0_32] : memref<1x16x128xf32, #tpu.memory_space<vmem>>, vector<1x16x128xf32>
    %51 = vector.shape_cast %50 : vector<1x16x128xf32> to vector<16x128xf32>
    %52 = vector.shape_cast %49 : vector<16x128xf32> to vector<1x16x128xf32>
    tpu.vector_store %arg8[%c0_30, %c0_31, %c0_32], %52 {strides = array<i32>} : memref<1x16x128xf32, #tpu.memory_space<vmem>>, vector<1x16x128xf32>,
    return
  }
  func.func @transform_0(%arg0: i32, %arg1: i32) -> (i32, i32, i32) {
    %c0_i32 = arith.constant 0 : i32
    %c0_i32_0 = arith.constant 0 : i32
    return %arg0, %arg1, %c0_i32 : i32, i32, i32
  }
  func.func @transform_1(%arg0: i32, %arg1: i32) -> (i32, i32, i32, i32) {
    %c0_i32 = arith.constant 0 : i32
    %c0_i32_0 = arith.constant 0 : i32
    %c0_i32_1 = arith.constant 0 : i32
    return %arg0, %arg1, %c0_i32, %c0_i32_0 : i32, i32, i32, i32
  }
  func.func @transform_2(%arg0: i32, %arg1: i32) -> (i32, i32) {
    %c0_i32 = arith.constant 0 : i32
    %c0_i32_0 = arith.constant 0 : i32
    %c0_i32_1 = arith.constant 0 : i32
    return %c0_i32, %c0_i32_0 : i32, i32
  }
  func.func @transform_3(%arg0: i32, %arg1: i32) -> (i32, i32) {
    %c0_i32 = arith.constant 0 : i32
    %c0_i32_0 = arith.constant 0 : i32
    %c0_i32_1 = arith.constant 0 : i32
    return %c0_i32, %c0_i32_0 : i32, i32
  }
  func.func @transform_4(%arg0: i32, %arg1: i32) -> (i32, i32) {
    %c0_i32 = arith.constant 0 : i32
    %c0_i32_0 = arith.constant 0 : i32
    %c0_i32_1 = arith.constant 0 : i32
    return %c0_i32, %c0_i32_0 : i32, i32
  }
  func.func @transform_5(%arg0: i32, %arg1: i32) -> (i32, i32) {
    %c0_i32 = arith.constant 0 : i32
    %c0_i32_0 = arith.constant 0 : i32
    %c0_i32_1 = arith.constant 0 : i32
    return %c0_i32, %c0_i32_0 : i32, i32
  }
  func.func @transform_6(%arg0: i32, %arg1: i32) -> (i32, i32, i32) {
    %c0_i32 = arith.constant 0 : i32
    %c0_i32_0 = arith.constant 0 : i32
    return %arg0, %arg1, %c0_i32 : i32, i32, i32
  }
}

module attributes {stable_mosaic.version = 11 : i64} {
  func.func @_linear_kernel(%arg0: i32, %arg1: i32, %arg2: memref<128x128xf32, #tpu.memory_space<vmem>>, %arg3: memref<128x256xf32, #tpu.memory_space<vmem>>, %arg4: memref<1x256xf32, #tpu.memory_space<vmem>>, %arg5: memref<128x256xf32, #tpu.memory_space<vmem>>) attributes {dimension_semantics = [#tpu.dimension_semantics<parallel>, #tpu.dimension_semantics<parallel>], iteration_bounds = array<i64: 1, 1>, scalar_prefetch = 0 : i64, scratch_operands = 0 : i64, tpu.core_type = #tpu.core_type<tc>, window_params = [{transform_indices = @transform_0, window_bounds = array<i64: 128, 128>}, {transform_indices = @transform_1, window_bounds = array<i64: 128, 256>}, {transform_indices = @transform_2, window_bounds = array<i64: 1, 256>}, {transform_indices = @transform_3, window_bounds = array<i64: 128, 256>}]} {
    %c0 = arith.constant 0 : index
    %c0_0 = arith.constant 0 : index
    %0 = vector.load %arg2[%c0, %c0_0] : memref<128x128xf32, #tpu.memory_space<vmem>>, vector<128x128xf32>
    %c0_1 = arith.constant 0 : index
    %c0_2 = arith.constant 0 : index
    %1 = vector.load %arg3[%c0_1, %c0_2] : memref<128x256xf32, #tpu.memory_space<vmem>>, vector<128x256xf32>
    %cst = arith.constant dense<0.000000e+00> : vector<128x256xf32>
    %2 = tpu.matmul %0, %1, %cst {dimension_numbers = #tpu.dot_dimension_numbers<[1], [0], [0], [1], [0, 0, 1, 1], [], []>} : vector<128x128xf32>, vector<128x256xf32>, vector<128x256xf32> -> vector<128x256xf32>
    %c0_3 = arith.constant 0 : index
    %c0_4 = arith.constant 0 : index
    %3 = vector.load %arg4[%c0_3, %c0_4] : memref<1x256xf32, #tpu.memory_space<vmem>>, vector<1x256xf32>
    %4 = vector.broadcast %3 : vector<1x256xf32> to vector<128x256xf32>
    %5 = arith.addf %2, %4 : vector<128x256xf32>
    %c0_5 = arith.constant 0 : index
    %c0_6 = arith.constant 0 : index
    %6 = vector.load %arg5[%c0_5, %c0_6] : memref<128x256xf32, #tpu.memory_space<vmem>>, vector<128x256xf32>
    tpu.vector_store %arg5[%c0_5, %c0_6], %5 {strides = array<i32>} : memref<128x256xf32, #tpu.memory_space<vmem>>, vector<128x256xf32>,
    return
  }
  func.func @transform_0(%arg0: i32, %arg1: i32) -> (i32, i32) {
    %c0_i32 = arith.constant 0 : i32
    %c0_i32_0 = arith.constant 0 : i32
    return %arg1, %c0_i32 : i32, i32
  }
  func.func @transform_1(%arg0: i32, %arg1: i32) -> (i32, i32) {
    %c0_i32 = arith.constant 0 : i32
    %c0_i32_0 = arith.constant 0 : i32
    return %c0_i32, %arg0 : i32, i32
  }
  func.func @transform_2(%arg0: i32, %arg1: i32) -> (i32, i32) {
    %c0_i32 = arith.constant 0 : i32
    %c0_i32_0 = arith.constant 0 : i32
    return %c0_i32, %arg0 : i32, i32
  }
  func.func @transform_3(%arg0: i32, %arg1: i32) -> (i32, i32) {
    %c0_i32 = arith.constant 0 : i32
    return %arg1, %arg0 : i32, i32
  }
}

</mosaic_0001>

<llo_original>
// kernel: cnn_lm_forward.3
$region0: #{cnn_lm_forward.3}
  #allocation0 [shape = 'u32[]', space=smem, size = 0x4, offset = 0x4, fixed_abs, tag = 'smem constant byte address 0x4 - core index']
  #allocation1 [shape = 'u32[72,128]{1,0:T(1,128)}', space=vmem, size = 0x9000, scoped, tag = 'internal scratch']
  #allocation2 [shape = 'f32[24,128]{1,0:T(8,128)}', space=vmem, size = 0x3000, scoped, tag = 'scratch operand']
  %s0 = inlined_call_operand.vmem [shape: f32[2,64,128], index: 0, kind: input, shape index: {}]
  %s1 = inlined_call_operand.vmem [shape: f32[2,4,2,128], index: 1, kind: input, shape index: {}]
  %s2 = inlined_call_operand.vmem [shape: f32[384,128], index: 2, kind: input, shape index: {}]
  %s3 = inlined_call_operand.vmem [shape: f32[1,128], index: 3, kind: input, shape index: {}]
  %s4 = inlined_call_operand.vmem [shape: f32[1,128], index: 4, kind: input, shape index: {}]
  %s5 = inlined_call_operand.vmem [shape: f32[1,128], index: 5, kind: input, shape index: {}]
  %s6 = inlined_call_operand.vmem [shape: f32[2,64,128], index: 6, kind: output, shape index: {}]
  %s7 = sld [smem:[#allocation0]]
  $region57: #{cnn_lm_forward.3} parent=0
    _
  %s9 = ssub.s32 1, %s7
  %s10 = scalar_select 0, %s9, %s7
  loop: start=0, step=1, limit=10
  $region2: #{cnn_lm_forward.3} parent=0 // loop_pre_header
    _
  $region3: #{cnn_lm_forward.3} parent=0 // loop_header
    %s12 = sphi 0, %s16
    %p13 = scmp.ge.s32.totalorder %s12, 10
    %s19 = sphi 0, %s31
    %s20 = sphi 0, %s27
    %s21 = sphi 0, %s19
    %s22 = sphi 0, %s20
    %s23 = sphi 0, %s21
    %s24 = sphi 0, %s22
    %s36 = sphi 0, %s38
    %s39 = sphi 0, %s36
    %s40 = sphi 0, %s39
    %s56 = sphi 0, %s40
    %s64 = sphi 0, %s66
    %s67 = sphi 0, %s64
    %s68 = sphi 0, %s67
    %s84 = sphi 0, %s68
    %s88 = sphi 0, %s88
    %s90 = sphi 0, %s88
    %s91 = sphi 0, %s90
    %s105 = sphi 0, %s91
    %s109 = sphi 0, %s109
    %s111 = sphi 0, %s109
    %s112 = sphi 0, %s111
    %s126 = sphi 0, %s112
    %s130 = sphi 0, %s130
    %s132 = sphi 0, %s130
    %s133 = sphi 0, %s132
    %s147 = sphi 0, %s133
    %s151 = sphi 0, %s151
    %s153 = sphi 0, %s151
    %s154 = sphi 0, %s153
    %s168 = sphi 0, %s154
    %s176 = sphi 0, %s178
    %s179 = sphi 0, %s176
    %s180 = sphi 0, %s179
    %s196 = sphi 0, %s180
  $region4: #{cnn_lm_forward.3} parent=0 // loop_header_branch
    %15 = sbr.rel (%p13) target = $region8
  $region5: #{cnn_lm_forward.3} parent=0 // loop_body
    %s17 = ssub.s32 %s12, 1
    %s18 = ssub.s32 %s12, 2
    %s25 = sadd.s32 1, %s20
    %p26 = scmp.ge.s32.totalorder %s25, 4
    %s27 = scalar_select %p26, 0, %s25
    %s28 = sadd.s32 1, %s19
    %s29 = scalar_select %p26, %s28, %s19
    %p30 = scmp.ge.s32.totalorder %s29, 2
    %s31 = scalar_select %p30, 0, %s29
    %s32 = ssub.s32 %s19, %s31
    %s33 = ssub.s32 %s20, %s27
    %s34 = sor.u32 %s32, %s33
    %p35 = scmp.eq.s32.totalorder %s34, 0
    %s37 = sadd.s32 %s36, 1
    %s38 = scalar_select %p35, %s36, %s37
    %p41 = pneg %p35
    %p42 = scmp.eq.s32.totalorder %s12, 7
    %p43 = por %p41, %p42
    %p44 = scmp.ne.s32.totalorder %s36, %s39
    %p45 = scmp.eq.s32.totalorder %s12, 0
    %p46 = por %p44, %p45
    %p47 = scmp.ne.s32.totalorder %s36, %s39
    %p48 = scmp.eq.s32.totalorder %s17, 7
    %p49 = por %p47, %p48
    %p50 = scmp.ne.s32.totalorder %s39, %s40
    %p51 = scmp.eq.s32.totalorder %s17, 0
    %p52 = por %p50, %p51
    %p53 = scmp.ne.s32.totalorder %s39, %s40
    %p54 = scmp.eq.s32.totalorder %s18, 7
    %p55 = por %p53, %p54
    %p57 = scmp.ne.s32.totalorder %s40, %s56
    %p58 = scmp.eq.s32.totalorder %s18, 0
    %p59 = por %p57, %p58
    %s60 = ssub.s32 %s19, %s31
    %s61 = ssub.s32 %s20, %s27
    %s62 = sor.u32 %s60, %s61
    %p63 = scmp.eq.s32.totalorder %s62, 0
    %s65 = sadd.s32 %s64, 1
    %s66 = scalar_select %p63, %s64, %s65
    %p69 = pneg %p63
    %p70 = scmp.eq.s32.totalorder %s12, 7
    %p71 = por %p69, %p70
    %p72 = scmp.ne.s32.totalorder %s64, %s67
    %p73 = scmp.eq.s32.totalorder %s12, 0
    %p74 = por %p72, %p73
    %p75 = scmp.ne.s32.totalorder %s64, %s67
    %p76 = scmp.eq.s32.totalorder %s17, 7
    %p77 = por %p75, %p76
    %p78 = scmp.ne.s32.totalorder %s67, %s68
    %p79 = scmp.eq.s32.totalorder %s17, 0
    %p80 = por %p78, %p79
    %p81 = scmp.ne.s32.totalorder %s67, %s68
    %p82 = scmp.eq.s32.totalorder %s18, 7
    %p83 = por %p81, %p82
    %p85 = scmp.ne.s32.totalorder %s68, %s84
    %p86 = scmp.eq.s32.totalorder %s18, 0
    %p87 = por %p85, %p86
    %s89 = sadd.s32 %s88, 1
    %p92 = scmp.eq.s32.totalorder %s12, 7
    %p93 = scmp.ne.s32.totalorder %s88, %s90
    %p94 = scmp.eq.s32.totalorder %s12, 0
    %p95 = por %p93, %p94
    %p96 = scmp.ne.s32.totalorder %s88, %s90
    %p97 = scmp.eq.s32.totalorder %s17, 7
    %p98 = por %p96, %p97
    %p99 = scmp.ne.s32.totalorder %s90, %s91
    %p100 = scmp.eq.s32.totalorder %s17, 0
    %p101 = por %p99, %p100
    %p102 = scmp.ne.s32.totalorder %s90, %s91
    %p103 = scmp.eq.s32.totalorder %s18, 7
    %p104 = por %p102, %p103
    %p106 = scmp.ne.s32.totalorder %s91, %s105
    %p107 = scmp.eq.s32.totalorder %s18, 0
    %p108 = por %p106, %p107
    %s110 = sadd.s32 %s109, 1
    %p113 = scmp.eq.s32.totalorder %s12, 7
    %p114 = scmp.ne.s32.totalorder %s109, %s111
    %p115 = scmp.eq.s32.totalorder %s12, 0
    %p116 = por %p114, %p115
    %p117 = scmp.ne.s32.totalorder %s109, %s111
    %p118 = scmp.eq.s32.totalorder %s17, 7
    %p119 = por %p117, %p118
    %p120 = scmp.ne.s32.totalorder %s111, %s112
    %p121 = scmp.eq.s32.totalorder %s17, 0
    %p122 = por %p120, %p121
    %p123 = scmp.ne.s32.totalorder %s111, %s112
    %p124 = scmp.eq.s32.totalorder %s18, 7
    %p125 = por %p123, %p124
    %p127 = scmp.ne.s32.totalorder %s112, %s126
    %p128 = scmp.eq.s32.totalorder %s18, 0
    %p129 = por %p127, %p128
    %s131 = sadd.s32 %s130, 1
    %p134 = scmp.eq.s32.totalorder %s12, 7
    %p135 = scmp.ne.s32.totalorder %s130, %s132
    %p136 = scmp.eq.s32.totalorder %s12, 0
    %p137 = por %p135, %p136
    %p138 = scmp.ne.s32.totalorder %s130, %s132
    %p139 = scmp.eq.s32.totalorder %s17, 7
    %p140 = por %p138, %p139
    %p141 = scmp.ne.s32.totalorder %s132, %s133
    %p142 = scmp.eq.s32.totalorder %s17, 0
    %p143 = por %p141, %p142
    %p144 = scmp.ne.s32.totalorder %s132, %s133
    %p145 = scmp.eq.s32.totalorder %s18, 7
    %p146 = por %p144, %p145
    %p148 = scmp.ne.s32.totalorder %s133, %s147
    %p149 = scmp.eq.s32.totalorder %s18, 0
    %p150 = por %p148, %p149
    %s152 = sadd.s32 %s151, 1
    %p155 = scmp.eq.s32.totalorder %s12, 7
    %p156 = scmp.ne.s32.totalorder %s151, %s153
    %p157 = scmp.eq.s32.totalorder %s12, 0
    %p158 = por %p156, %p157
    %p159 = scmp.ne.s32.totalorder %s151, %s153
    %p160 = scmp.eq.s32.totalorder %s17, 7
    %p161 = por %p159, %p160
    %p162 = scmp.ne.s32.totalorder %s153, %s154
    %p163 = scmp.eq.s32.totalorder %s17, 0
    %p164 = por %p162, %p163
    %p165 = scmp.ne.s32.totalorder %s153, %s154
    %p166 = scmp.eq.s32.totalorder %s18, 7
    %p167 = por %p165, %p166
    %p169 = scmp.ne.s32.totalorder %s154, %s168
    %p170 = scmp.eq.s32.totalorder %s18, 0
    %p171 = por %p169, %p170
    %s172 = ssub.s32 %s19, %s31
    %s173 = ssub.s32 %s20, %s27
    %s174 = sor.u32 %s172, %s173
    %p175 = scmp.eq.s32.totalorder %s174, 0
    %s177 = sadd.s32 %s176, 1
    %s178 = scalar_select %p175, %s176, %s177
    %p181 = pneg %p175
    %p182 = scmp.eq.s32.totalorder %s12, 7
    %p183 = por %p181, %p182
    %p184 = scmp.ne.s32.totalorder %s176, %s179
    %p185 = scmp.eq.s32.totalorder %s12, 0
    %p186 = por %p184, %p185
    %p187 = scmp.ne.s32.totalorder %s176, %s179
    %p188 = scmp.eq.s32.totalorder %s17, 7
    %p189 = por %p187, %p188
    %p190 = scmp.ne.s32.totalorder %s179, %s180
    %p191 = scmp.eq.s32.totalorder %s17, 0
    %p192 = por %p190, %p191
    %p193 = scmp.ne.s32.totalorder %s179, %s180
    %p194 = scmp.eq.s32.totalorder %s18, 7
    %p195 = por %p193, %p194
    %p197 = scmp.ne.s32.totalorder %s180, %s196
    %p198 = scmp.eq.s32.totalorder %s18, 0
    %p199 = por %p197, %p198
    %p200 = scmp.le.s32.totalorder 1, %s12
    %p201 = scmp.lt.s32.totalorder %s12, 9
    %p202 = pnand %p200, %p201
    %p203 = pneg %p202
    // Predicated region
    $region9: #{cnn_lm_forward.3} parent=5 // pred_check
      _
    $region10: #{cnn_lm_forward.3} parent=5 // pred_check_branch
      %205 = sbr.rel (%p202) target = $region12
    $region11: #{cnn_lm_forward.3} parent=5 // pred_region
      %s206 = ssub.s32 %s12, 1
      // Predicated region
      $region13: #{cnn_lm_forward.3} parent=11 // pred_check
        %p207 = pneg %p101
      $region14: #{cnn_lm_forward.3} parent=11 // pred_check_branch
        %209 = sbr.rel (%p207) target = $region16
      $region15: #{cnn_lm_forward.3} parent=11 // pred_region
        _
      $region16: #{cnn_lm_forward.3} parent=11 // pred_fallthru
        _
      // Predicated region
      $region17: #{cnn_lm_forward.3} parent=11 // pred_check
        %p210 = pneg %p122
      $region18: #{cnn_lm_forward.3} parent=11 // pred_check_branch
        %212 = sbr.rel (%p210) target = $region20
      $region19: #{cnn_lm_forward.3} parent=11 // pred_region
        _
      $region20: #{cnn_lm_forward.3} parent=11 // pred_fallthru
        _
      // Predicated region
      $region21: #{cnn_lm_forward.3} parent=11 // pred_check
        %p213 = pneg %p143
      $region22: #{cnn_lm_forward.3} parent=11 // pred_check_branch
        %215 = sbr.rel (%p213) target = $region24
      $region23: #{cnn_lm_forward.3} parent=11 // pred_region
        _
      $region24: #{cnn_lm_forward.3} parent=11 // pred_fallthru
        _
      // Predicated region
      $region25: #{cnn_lm_forward.3} parent=11 // pred_check
        %p216 = pneg %p164
      $region26: #{cnn_lm_forward.3} parent=11 // pred_check_branch
        %218 = sbr.rel (%p216) target = $region28
      $region27: #{cnn_lm_forward.3} parent=11 // pred_region
        _
      $region28: #{cnn_lm_forward.3} parent=11 // pred_fallthru
        _
    $region12: #{cnn_lm_forward.3} parent=5 // pred_fallthru
      _
    %p219 = scmp.lt.s32.totalorder %s12, 8
    // Predicated region
    $region29: #{cnn_lm_forward.3} parent=5 // pred_check
      %p220 = pneg %p219
    $region30: #{cnn_lm_forward.3} parent=5 // pred_check_branch
      %222 = sbr.rel (%p220) target = $region32
    $region31: #{cnn_lm_forward.3} parent=5 // pred_region
      // Predicated region
      $region33: #{cnn_lm_forward.3} parent=31 // pred_check
        %p223 = pneg %p46
      $region34: #{cnn_lm_forward.3} parent=31 // pred_check_branch
        %225 = sbr.rel (%p223) target = $region36
      $region35: #{cnn_lm_forward.3} parent=31 // pred_region
        %s226 = smul.u32 2, %s20
        %p227 = scmp.lt.s32.totalorder %s19, 1
        %s228 = scalar_select %p227, %s19, 1
        %p229 = scmp.lt.s32.totalorder %s226, 7
        %s230 = scalar_select %p229, %s226, 7
        %s231 = smul.addr %s228, 8
        %s232 = sadd.s32 %s230, %s231
        %s233 = smul.addr %s232, 8
        %s234 = scalar_lea.vmem %s0, %s233
        %s235 = smul.u32 2, %s20
      $region36: #{cnn_lm_forward.3} parent=31 // pred_fallthru
        _
      // Predicated region
      $region37: #{cnn_lm_forward.3} parent=31 // pred_check
        %p236 = pneg %p74
      $region38: #{cnn_lm_forward.3} parent=31 // pred_check_branch
        %238 = sbr.rel (%p236) target = $region40
      $region39: #{cnn_lm_forward.3} parent=31 // pred_region
        %p239 = scmp.lt.s32.totalorder %s19, 1
        %s240 = scalar_select %p239, %s19, 1
        %p241 = scmp.lt.s32.totalorder %s20, 3
        %s242 = scalar_select %p241, %s20, 3
        %s243 = smul.addr %s240, 4
        %s244 = sadd.s32 %s242, %s243
        %s245 = smul.addr %s244, 2
        %s246 = scalar_lea.vmem %s1, %s245
      $region40: #{cnn_lm_forward.3} parent=31 // pred_fallthru
        _
    $region32: #{cnn_lm_forward.3} parent=5 // pred_fallthru
      _
    %p247 = scmp.le.s32.totalorder 1, %s12
    %p248 = scmp.lt.s32.totalorder %s12, 9
    %p249 = pnand %p247, %p248
    %p250 = pneg %p249
    // Predicated region
    $region41: #{cnn_lm_forward.3} parent=5 // pred_check
      _
    $region42: #{cnn_lm_forward.3} parent=5 // pred_check_branch
      %252 = sbr.rel (%p249) target = $region44
    $region43: #{cnn_lm_forward.3} parent=5 // pred_region
      %s253 = ssub.s32 %s12, 1
      %s254 = smul.u32 2, %s22
      %p255 = scmp.lt.s32.totalorder %s21, 1
      %s256 = scalar_select %p255, %s21, 1
      %p257 = scmp.lt.s32.totalorder %s254, 7
      %s258 = scalar_select %p257, %s254, 7
      %s259 = smul.addr %s256, 8
      %s260 = sadd.s32 %s258, %s259
      %s261 = smul.addr %s260, 8
      %s262 = scalar_lea.vmem %s0, %s261
      %p263 = pneg %p52
      %p264 = pneg %p49
      %p265 = scmp.lt.s32.totalorder %s21, 1
      %s266 = scalar_select %p265, %s21, 1
      %p267 = scmp.lt.s32.totalorder %s22, 3
      %s268 = scalar_select %p267, %s22, 3
      %s269 = smul.addr %s266, 4
      %s270 = sadd.s32 %s268, %s269
      %s271 = smul.addr %s270, 2
      %s272 = scalar_lea.vmem %s1, %s271
      %p273 = pneg %p80
      %p274 = pneg %p77
      %p275 = pneg %p101
      %p276 = pneg %p98
      %p277 = pneg %p122
      %p278 = pneg %p119
      %p279 = pneg %p143
      %p280 = pneg %p140
      %p281 = pneg %p164
      %p282 = pneg %p161
      %p283 = pneg %p192
      %p284 = pneg %p189
      %s285 = smul.u32 2, %s22
      %p286 = scmp.lt.s32.totalorder %s21, 1
      %s287 = scalar_select %p286, %s21, 1
      %p288 = scmp.lt.s32.totalorder %s285, 7
      %s289 = scalar_select %p288, %s285, 7
      %s290 = smul.addr %s287, 8
      %s291 = sadd.s32 %s289, %s290
      %s292 = smul.addr %s291, 8
      %s293 = scalar_lea.vmem %s6, %s292
      %s294 = smul.u32 2, %s22
      %p295 = scmp.lt.s32.totalorder %s21, 1
      %s296 = scalar_select %p295, %s21, 1
      %p297 = scmp.lt.s32.totalorder %s294, 7
      %s298 = scalar_select %p297, %s294, 7
      %s299 = smul.addr %s296, 8
      %s300 = sadd.s32 %s298, %s299
      %s301 = smul.addr %s300, 8
      %s302 = scalar_lea.vmem %s0, %s301
      %s303 = smul.u32 2, %s22
      %p304 = scmp.lt.s32.totalorder %s21, 1
      %s305 = scalar_select %p304, %s21, 1
      %p306 = scmp.lt.s32.totalorder %s22, 3
      %s307 = scalar_select %p306, %s22, 3
      %s308 = smul.addr %s305, 4
      %s309 = sadd.s32 %s307, %s308
      %s310 = smul.addr %s309, 2
      %s311 = scalar_lea.vmem %s1, %s310
      %s312 = smul.u32 2, %s22
      %p313 = scmp.lt.s32.totalorder %s21, 1
      %s314 = scalar_select %p313, %s21, 1
      %p315 = scmp.lt.s32.totalorder %s312, 7
      %s316 = scalar_select %p315, %s312, 7
      %s317 = smul.addr %s314, 8
      %s318 = sadd.s32 %s316, %s317
      %s319 = smul.addr %s318, 8
      %s320 = scalar_lea.vmem %s6, %s319
      %s321 = smul.u32 2, %s22
      %v322 = vld [vmem:[%s302] sm:$0xff]
      %v323 = vld [vmem:[%s302 + $0x8] sm:$0xff]
      %324 = vst [vmem:[#allocation2 + $0x8] sm:$0xff] %v322
      %325 = vst [vmem:[#allocation2 + $0x10] sm:$0xff] %v323
      %v326 = vld [vmem:[%s311] sm:$0x3]
      %327 = vst [vmem:[#allocation2 + $0x6] sm:$0x3] %v326
      %v328 = vld [vmem:[#allocation2 + $0x6] sm:$0xff]
      %v329 = vld [vmem:[#allocation2 + $0xe] sm:$0xff]
      %v330 = vld [vmem:[#allocation2 + $0x7] sm:$0xff]
      %v331 = vld [vmem:[#allocation2 + $0xf] sm:$0xff]
      %v332 = vld [vmem:[#allocation2 + $0x8] sm:$0xff]
      %v333 = vld [vmem:[#allocation2 + $0x10] sm:$0xff]
      %v334 = vld [vmem:[%s2] sm:$0xff]
      %v335 = vld [vmem:[%s2 + $0x8] sm:$0xff]
      %v336 = vld [vmem:[%s2 + $0x10] sm:$0xff]
      %v337 = vld [vmem:[%s2 + $0x18] sm:$0xff]
      %v338 = vld [vmem:[%s2 + $0x20] sm:$0xff]
      %v339 = vld [vmem:[%s2 + $0x28] sm:$0xff]
      %v340 = vld [vmem:[%s2 + $0x30] sm:$0xff]
      %v341 = vld [vmem:[%s2 + $0x38] sm:$0xff]
      %v342 = vld [vmem:[%s2 + $0x40] sm:$0xff]
      %v343 = vld [vmem:[%s2 + $0x48] sm:$0xff]
      %v344 = vld [vmem:[%s2 + $0x50] sm:$0xff]
      %v345 = vld [vmem:[%s2 + $0x58] sm:$0xff]
      %v346 = vld [vmem:[%s2 + $0x60] sm:$0xff]
      %v347 = vld [vmem:[%s2 + $0x68] sm:$0xff]
      %v348 = vld [vmem:[%s2 + $0x70] sm:$0xff]
      %v349 = vld [vmem:[%s2 + $0x78] sm:$0xff]
      %v350 = vld [vmem:[%s2 + $0x80] sm:$0xff]
      %v351 = vld [vmem:[%s2 + $0x88] sm:$0xff]
      %v352 = vld [vmem:[%s2 + $0x90] sm:$0xff]
      %v353 = vld [vmem:[%s2 + $0x98] sm:$0xff]
      %v354 = vld [vmem:[%s2 + $0xa0] sm:$0xff]
      %v355 = vld [vmem:[%s2 + $0xa8] sm:$0xff]
      %v356 = vld [vmem:[%s2 + $0xb0] sm:$0xff]
      %v357 = vld [vmem:[%s2 + $0xb8] sm:$0xff]
      %v358 = vld [vmem:[%s2 + $0xc0] sm:$0xff]
      %v359 = vld [vmem:[%s2 + $0xc8] sm:$0xff]
      %v360 = vld [vmem:[%s2 + $0xd0] sm:$0xff]
      %v361 = vld [vmem:[%s2 + $0xd8] sm:$0xff]
      %v362 = vld [vmem:[%s2 + $0xe0] sm:$0xff]
      %v363 = vld [vmem:[%s2 + $0xe8] sm:$0xff]
      %v364 = vld [vmem:[%s2 + $0xf0] sm:$0xff]
      %v365 = vld [vmem:[%s2 + $0xf8] sm:$0xff]
      %v366 = vld [vmem:[%s2 + $0x100] sm:$0xff]
      %v367 = vld [vmem:[%s2 + $0x108] sm:$0xff]
      %v368 = vld [vmem:[%s2 + $0x110] sm:$0xff]
      %v369 = vld [vmem:[%s2 + $0x118] sm:$0xff]
      %v370 = vld [vmem:[%s2 + $0x120] sm:$0xff]
      %v371 = vld [vmem:[%s2 + $0x128] sm:$0xff]
      %v372 = vld [vmem:[%s2 + $0x130] sm:$0xff]
      %v373 = vld [vmem:[%s2 + $0x138] sm:$0xff]
      %v374 = vld [vmem:[%s2 + $0x140] sm:$0xff]
      %v375 = vld [vmem:[%s2 + $0x148] sm:$0xff]
      %v376 = vld [vmem:[%s2 + $0x150] sm:$0xff]
      %v377 = vld [vmem:[%s2 + $0x158] sm:$0xff]
      %v378 = vld [vmem:[%s2 + $0x160] sm:$0xff]
      %v379 = vld [vmem:[%s2 + $0x168] sm:$0xff]
      %v380 = vld [vmem:[%s2 + $0x170] sm:$0xff]
      %v381 = vld [vmem:[%s2 + $0x178] sm:$0xff]
      %v382 = vld [vmem:[%s3] sm:$0x1]
      %v384 = vperm.slane %v382, 0
      %386 = vmatpush.msra.mxu0 %v349
      %387 = vmatpush.msra.mxu0 %v348
      %388 = vmatpush.msra.mxu0 %v347
      %389 = vmatpush.msra.mxu0 %v346
      %390 = vmatpush.msra.mxu0 %v345
      %391 = vmatpush.msra.mxu0 %v344
      %392 = vmatpush.msra.mxu0 %v343
      %393 = vmatpush.msra.mxu0 %v342
      %394 = vmatpush.msra.mxu0 %v341
      %395 = vmatpush.msra.mxu0 %v340
      %396 = vmatpush.msra.mxu0 %v339
      %397 = vmatpush.msra.mxu0 %v338
      %398 = vmatpush.msra.mxu0 %v337
      %399 = vmatpush.msra.mxu0 %v336
      %400 = vmatpush.msra.mxu0 %v335
      %401 = vmatpush.msra.mxu0 %v334
      %402 = vmatmul.f32.gmra.mxu0 %v328
      %v403 = vpop.f32.mrf.mxu0
      %v404 = vadd.f32 %v384, %v403
      %405 = vmatmul.f32.gmra.mxu0 %v329
      %v406 = vpop.f32.mrf.mxu0
      %v407 = vadd.f32 %v384, %v406
      %408 = vdwg.mxu0
      %409 = vmatpush.msra.mxu0 %v365
      %410 = vmatpush.msra.mxu0 %v364
      %411 = vmatpush.msra.mxu0 %v363
      %412 = vmatpush.msra.mxu0 %v362
      %413 = vmatpush.msra.mxu0 %v361
      %414 = vmatpush.msra.mxu0 %v360
      %415 = vmatpush.msra.mxu0 %v359
      %416 = vmatpush.msra.mxu0 %v358
      %417 = vmatpush.msra.mxu0 %v357
      %418 = vmatpush.msra.mxu0 %v356
      %419 = vmatpush.msra.mxu0 %v355
      %420 = vmatpush.msra.mxu0 %v354
      %421 = vmatpush.msra.mxu0 %v353
      %422 = vmatpush.msra.mxu0 %v352
      %423 = vmatpush.msra.mxu0 %v351
      %424 = vmatpush.msra.mxu0 %v350
      %425 = vmatmul.f32.gmra.mxu0 %v330
      %v426 = vpop.f32.mrf.mxu0
      %v427 = vadd.f32 %v404, %v426
      %428 = vmatmul.f32.gmra.mxu0 %v331
      %v429 = vpop.f32.mrf.mxu0
      %v430 = vadd.f32 %v407, %v429
      %431 = vdwg.mxu0
      %432 = vmatpush.msra.mxu0 %v381
      %433 = vmatpush.msra.mxu0 %v380
      %434 = vmatpush.msra.mxu0 %v379
      %435 = vmatpush.msra.mxu0 %v378
      %436 = vmatpush.msra.mxu0 %v377
      %437 = vmatpush.msra.mxu0 %v376
      %438 = vmatpush.msra.mxu0 %v375
      %439 = vmatpush.msra.mxu0 %v374
      %440 = vmatpush.msra.mxu0 %v373
      %441 = vmatpush.msra.mxu0 %v372
      %442 = vmatpush.msra.mxu0 %v371
      %443 = vmatpush.msra.mxu0 %v370
      %444 = vmatpush.msra.mxu0 %v369
      %445 = vmatpush.msra.mxu0 %v368
      %446 = vmatpush.msra.mxu0 %v367
      %447 = vmatpush.msra.mxu0 %v366
      %448 = vmatmul.f32.gmra.mxu0 %v332
      %v449 = vpop.f32.mrf.mxu0
      %v450 = vadd.f32 %v427, %v449
      %451 = vmatmul.f32.gmra.mxu0 %v333
      %v452 = vpop.f32.mrf.mxu0
      %v453 = vadd.f32 %v430, %v452
      %454 = vdwg.mxu0
      %455 = vadd.xlane.f32.xlu0 %v450
      %v456 = vpop.xlane.xlu0 %455
      %457 = vadd.xlane.f32.xlu0 %v453
      %v458 = vpop.xlane.xlu0 %457
      %v459 = vrcp.pop 128.0
      %v460 = vmul.f32 128.0, %v459
      %v461 = vsub.f32 1.0, %v460
      %v462 = vmul.f32 %v459, %v461
      %v463 = vadd.f32 %v459, %v462
      %vm464 = vweird.f32 %v459
      %v465 = vsel %vm464, %v459, %v463
      %v466 = vmul.f32 %v456, %v465
      %v467 = vmul.f32 %v458, %v465
      %v468 = vsub.f32 %v450, %v466
      %v469 = vsub.f32 %v453, %v467
      %v470 = vmul.f32 %v468, %v468
      %v471 = vmul.f32 %v469, %v469
      %472 = vadd.xlane.f32.xlu0 %v470
      %v473 = vpop.xlane.xlu0 %472
      %474 = vadd.xlane.f32.xlu0 %v471
      %v475 = vpop.xlane.xlu0 %474
      %v476 = vmul.f32 %v473, %v465
      %v477 = vmul.f32 %v475, %v465
      %v478 = vadd.f32 %v476, 1e-05
      %v479 = vadd.f32 %v477, 1e-05
      %v480 = vrsqrt.pop %v478
      %v481 = vmul.f32 %v480, %v478
      %v482 = vmul.f32 %v481, %v480
      %v483 = vmul.f32 0.5, %v482
      %v484 = vsub.f32 1.5, %v483
      %v485 = vmul.f32 %v480, %v484
      %vm486 = vweird.f32 %v478
      %vm487 = vweird.f32 %v480
      %vm488 = vmor %vm486, %vm487
      %v489 = vsel %vm488, %v480, %v485
      %v490 = vrsqrt.pop %v479
      %v491 = vmul.f32 %v490, %v479
      %v492 = vmul.f32 %v491, %v490
      %v493 = vmul.f32 0.5, %v492
      %v494 = vsub.f32 1.5, %v493
      %v495 = vmul.f32 %v490, %v494
      %vm496 = vweird.f32 %v479
      %vm497 = vweird.f32 %v490
      %vm498 = vmor %vm496, %vm497
      %v499 = vsel %vm498, %v490, %v495
      %v500 = vmul.f32 %v468, %v489
      %v501 = vmul.f32 %v469, %v499
      %v502 = vld [vmem:[%s4] sm:$0x1]
      %v504 = vperm.slane %v502, 0
      %v506 = vmul.f32 %v500, %v504
      %v507 = vmul.f32 %v501, %v504
      %v508 = vld [vmem:[%s5] sm:$0x1]
      %v510 = vperm.slane %v508, 0
      %v512 = vadd.f32 %v506, %v510
      %v513 = vadd.f32 %v507, %v510
      %v514 = vmul.f32 %v512, 0.5
      %v515 = vmul.f32 %v513, 0.5
      %v516 = vmul.f32 %v512, %v512
      %v517 = vmul.f32 %v513, %v513
      %v518 = vmul.f32 %v516, %v512
      %v519 = vmul.f32 %v517, %v513
      %v520 = vmul.f32 %v518, 0.044715
      %v521 = vmul.f32 %v519, 0.044715
      %v522 = vadd.f32 %v512, %v520
      %v523 = vadd.f32 %v513, %v521
      %v524 = vmul.f32 %v522, 0.7978846
      %v525 = vmul.f32 %v523, 0.7978846
      %v526 = vtanh.pop %v524
      %v527 = vtanh.pop %v525
      %v528 = vadd.f32 %v526, 1.0
      %v529 = vadd.f32 %v527, 1.0
      %v530 = vmul.f32 %v514, %v528
      %v531 = vmul.f32 %v515, %v529
      %532 = vst [vmem:[%s320] sm:$0xff] %v530
      %533 = vst [vmem:[%s320 + $0x8] sm:$0xff] %v531
      %s534 = smul.u32 2, %s22
      %p535 = scmp.lt.s32.totalorder %s21, 1
      %s536 = scalar_select %p535, %s21, 1
      %p537 = scmp.lt.s32.totalorder %s534, 7
      %s538 = scalar_select %p537, %s534, 7
      %s539 = smul.addr %s536, 8
      %s540 = sadd.s32 %s538, %s539
      %s541 = smul.addr %s540, 8
      %s542 = scalar_lea.vmem %s6, %s541
      // Predicated region
      $region45: #{cnn_lm_forward.3} parent=43 // pred_check
        %p543 = pneg %p189
      $region46: #{cnn_lm_forward.3} parent=43 // pred_check_branch
        %545 = sbr.rel (%p543) target = $region48
      $region47: #{cnn_lm_forward.3} parent=43 // pred_region
        %s546 = smul.u32 2, %s22
      $region48: #{cnn_lm_forward.3} parent=43 // pred_fallthru
        _
    $region44: #{cnn_lm_forward.3} parent=5 // pred_fallthru
      _
    %p547 = scmp.le.s32.totalorder 2, %s12
    // Predicated region
    $region49: #{cnn_lm_forward.3} parent=5 // pred_check
      %p548 = pneg %p547
    $region50: #{cnn_lm_forward.3} parent=5 // pred_check_branch
      %550 = sbr.rel (%p548) target = $region52
    $region51: #{cnn_lm_forward.3} parent=5 // pred_region
      %s551 = ssub.s32 %s12, 2
      // Predicated region
      $region53: #{cnn_lm_forward.3} parent=51 // pred_check
        %p552 = pneg %p195
      $region54: #{cnn_lm_forward.3} parent=51 // pred_check_branch
        %554 = sbr.rel (%p552) target = $region56
      $region55: #{cnn_lm_forward.3} parent=51 // pred_region
        %s555 = smul.u32 2, %s24
        %p556 = scmp.lt.s32.totalorder %s23, 1
        %s557 = scalar_select %p556, %s23, 1
        %p558 = scmp.lt.s32.totalorder %s555, 7
        %s559 = scalar_select %p558, %s555, 7
        %s560 = smul.addr %s557, 8
        %s561 = sadd.s32 %s559, %s560
        %s562 = smul.addr %s561, 8
        %s563 = scalar_lea.vmem %s6, %s562
      $region56: #{cnn_lm_forward.3} parent=51 // pred_fallthru
        _
    $region52: #{cnn_lm_forward.3} parent=5 // pred_fallthru
      _
  $region6: #{cnn_lm_forward.3} parent=0 // loop_footer
    %s16 = sadd.s32 1, %s12
  $region7: #{cnn_lm_forward.3} parent=0 // loop_footer_branch
    %11 = sbr.rel target = $region3
  $region8: #{cnn_lm_forward.3} parent=0 // loop_exit
    _

// kernel: cnn_lm_forward.5
$region0: #{cnn_lm_forward.5}
  #allocation0 [shape = 'u32[]', space=smem, size = 0x4, offset = 0x4, fixed_abs, tag = 'smem constant byte address 0x4 - core index']
  #allocation1 [shape = 'u32[72,128]{1,0:T(1,128)}', space=vmem, size = 0x9000, scoped, tag = 'internal scratch']
  %s0 = inlined_call_operand.vmem [shape: f32[128,128], index: 0, kind: input, shape index: {}]
  %s1 = inlined_call_operand.vmem [shape: f32[128,256], index: 1, kind: input, shape index: {}]
  %s2 = inlined_call_operand.vmem [shape: f32[1,256], index: 2, kind: input, shape index: {}]
  %s3 = inlined_call_operand.hbm [shape: f32[128,256], index: 3, kind: output, shape index: {}]
  %s4 = sld [smem:[#allocation0]]
  $region22: #{cnn_lm_forward.5} parent=0
    _
  %s6 = ssub.s32 1, %s4
  %s7 = scalar_select 0, %s6, %s4
  $region1: #{cnn_lm_forward.5} parent=0
    #allocation2 [shape = 'u8[131072]{0}', space=vmem, size = 0x20000, scoped, tag = 'output window, operand 0, single buffered']
    #allocation3 [shape = 's32[1]{0}', space=sflag, size = 0x4, scoped, tag = 'scoped memory for cnn_lm_forward.5']
    %8 = vsyncpa [#allocation3], 0
    // Predicated region
    $region2: #{cnn_lm_forward.5} parent=1 // pred_check
      _
    $region3: #{cnn_lm_forward.5} parent=1 // pred_check_branch
      %10 = sbr.rel (0) target = $region5
    $region4: #{cnn_lm_forward.5} parent=1 // pred_region
      _
    $region5: #{cnn_lm_forward.5} parent=1 // pred_fallthru
      _
    // Predicated region
    $region6: #{cnn_lm_forward.5} parent=1 // pred_check
      _
    $region7: #{cnn_lm_forward.5} parent=1 // pred_check_branch
      %12 = sbr.rel (0) target = $region9
    $region8: #{cnn_lm_forward.5} parent=1 // pred_region
      _
    $region9: #{cnn_lm_forward.5} parent=1 // pred_fallthru
      _
    // Predicated region
    $region10: #{cnn_lm_forward.5} parent=1 // pred_check
      _
    $region11: #{cnn_lm_forward.5} parent=1 // pred_check_branch
      %14 = sbr.rel (0) target = $region13
    $region12: #{cnn_lm_forward.5} parent=1 // pred_region
      _
    $region13: #{cnn_lm_forward.5} parent=1 // pred_fallthru
      _
    %v15 = vld [vmem:[%s0] sm:$0xff]
    %v16 = vld [vmem:[%s0 + $0x8] sm:$0xff]
    %v17 = vld [vmem:[%s0 + $0x10] sm:$0xff]
    %v18 = vld [vmem:[%s0 + $0x18] sm:$0xff]
    %v19 = vld [vmem:[%s0 + $0x20] sm:$0xff]
    %v20 = vld [vmem:[%s0 + $0x28] sm:$0xff]
    %v21 = vld [vmem:[%s0 + $0x30] sm:$0xff]
    %v22 = vld [vmem:[%s0 + $0x38] sm:$0xff]
    %v23 = vld [vmem:[%s0 + $0x40] sm:$0xff]
    %v24 = vld [vmem:[%s0 + $0x48] sm:$0xff]
    %v25 = vld [vmem:[%s0 + $0x50] sm:$0xff]
    %v26 = vld [vmem:[%s0 + $0x58] sm:$0xff]
    %v27 = vld [vmem:[%s0 + $0x60] sm:$0xff]
    %v28 = vld [vmem:[%s0 + $0x68] sm:$0xff]
    %v29 = vld [vmem:[%s0 + $0x70] sm:$0xff]
    %v30 = vld [vmem:[%s0 + $0x78] sm:$0xff]
    %v31 = vld [vmem:[%s1] sm:$0xff]
    %v32 = vld [vmem:[%s1 + $0x8] sm:$0xff]
    %v33 = vld [vmem:[%s1 + $0x10] sm:$0xff]
    %v34 = vld [vmem:[%s1 + $0x18] sm:$0xff]
    %v35 = vld [vmem:[%s1 + $0x20] sm:$0xff]
    %v36 = vld [vmem:[%s1 + $0x28] sm:$0xff]
    %v37 = vld [vmem:[%s1 + $0x30] sm:$0xff]
    %v38 = vld [vmem:[%s1 + $0x38] sm:$0xff]
    %v39 = vld [vmem:[%s1 + $0x40] sm:$0xff]
    %v40 = vld [vmem:[%s1 + $0x48] sm:$0xff]
    %v41 = vld [vmem:[%s1 + $0x50] sm:$0xff]
    %v42 = vld [vmem:[%s1 + $0x58] sm:$0xff]
    %v43 = vld [vmem:[%s1 + $0x60] sm:$0xff]
    %v44 = vld [vmem:[%s1 + $0x68] sm:$0xff]
    %v45 = vld [vmem:[%s1 + $0x70] sm:$0xff]
    %v46 = vld [vmem:[%s1 + $0x78] sm:$0xff]
    %v47 = vld [vmem:[%s1 + $0x80] sm:$0xff]
    %v48 = vld [vmem:[%s1 + $0x88] sm:$0xff]
    %v49 = vld [vmem:[%s1 + $0x90] sm:$0xff]
    %v50 = vld [vmem:[%s1 + $0x98] sm:$0xff]
    %v51 = vld [vmem:[%s1 + $0xa0] sm:$0xff]
    %v52 = vld [vmem:[%s1 + $0xa8] sm:$0xff]
    %v53 = vld [vmem:[%s1 + $0xb0] sm:$0xff]
    %v54 = vld [vmem:[%s1 + $0xb8] sm:$0xff]
    %v55 = vld [vmem:[%s1 + $0xc0] sm:$0xff]
    %v56 = vld [vmem:[%s1 + $0xc8] sm:$0xff]
    %v57 = vld [vmem:[%s1 + $0xd0] sm:$0xff]
    %v58 = vld [vmem:[%s1 + $0xd8] sm:$0xff]
    %v59 = vld [vmem:[%s1 + $0xe0] sm:$0xff]
    %v60 = vld [vmem:[%s1 + $0xe8] sm:$0xff]
    %v61 = vld [vmem:[%s1 + $0xf0] sm:$0xff]
    %v62 = vld [vmem:[%s1 + $0xf8] sm:$0xff]
    %v63 = vld [vmem:[%s2] sm:$0x3]
    %v65 = vperm.slane %v63, 0
    %v66 = vperm.slane %v63, 1
    %69 = vmatpush.msra.mxu0 %v61
    %70 = vmatpush.msra.mxu0 %v59
    %71 = vmatpush.msra.mxu0 %v57
    %72 = vmatpush.msra.mxu0 %v55
    %73 = vmatpush.msra.mxu0 %v53
    %74 = vmatpush.msra.mxu0 %v51
    %75 = vmatpush.msra.mxu0 %v49
    %76 = vmatpush.msra.mxu0 %v47
    %77 = vmatpush.msra.mxu0 %v45
    %78 = vmatpush.msra.mxu0 %v43
    %79 = vmatpush.msra.mxu0 %v41
    %80 = vmatpush.msra.mxu0 %v39
    %81 = vmatpush.msra.mxu0 %v37
    %82 = vmatpush.msra.mxu0 %v35
    %83 = vmatpush.msra.mxu0 %v33
    %84 = vmatpush.msra.mxu0 %v31
    %85 = vmatmul.f32.gmra.mxu0 %v15
    %v86 = vpop.f32.mrf.mxu0
    %v87 = vadd.f32 %v65, %v86
    %88 = vmatmul.f32.gmra.mxu0 %v16
    %v89 = vpop.f32.mrf.mxu0
    %v90 = vadd.f32 %v65, %v89
    %91 = vmatmul.f32.gmra.mxu0 %v17
    %v92 = vpop.f32.mrf.mxu0
    %v93 = vadd.f32 %v65, %v92
    %94 = vmatmul.f32.gmra.mxu0 %v18
    %v95 = vpop.f32.mrf.mxu0
    %v96 = vadd.f32 %v65, %v95
    %97 = vmatmul.f32.gmra.mxu0 %v19
    %v98 = vpop.f32.mrf.mxu0
    %v99 = vadd.f32 %v65, %v98
    %100 = vmatmul.f32.gmra.mxu0 %v20
    %v101 = vpop.f32.mrf.mxu0
    %v102 = vadd.f32 %v65, %v101
    %103 = vmatmul.f32.gmra.mxu0 %v21
    %v104 = vpop.f32.mrf.mxu0
    %v105 = vadd.f32 %v65, %v104
    %106 = vmatmul.f32.gmra.mxu0 %v22
    %v107 = vpop.f32.mrf.mxu0
    %v108 = vadd.f32 %v65, %v107
    %109 = vmatmul.f32.gmra.mxu0 %v23
    %v110 = vpop.f32.mrf.mxu0
    %v111 = vadd.f32 %v65, %v110
    %112 = vmatmul.f32.gmra.mxu0 %v24
    %v113 = vpop.f32.mrf.mxu0
    %v114 = vadd.f32 %v65, %v113
    %115 = vmatmul.f32.gmra.mxu0 %v25
    %v116 = vpop.f32.mrf.mxu0
    %v117 = vadd.f32 %v65, %v116
    %118 = vmatmul.f32.gmra.mxu0 %v26
    %v119 = vpop.f32.mrf.mxu0
    %v120 = vadd.f32 %v65, %v119
    %121 = vmatmul.f32.gmra.mxu0 %v27
    %v122 = vpop.f32.mrf.mxu0
    %v123 = vadd.f32 %v65, %v122
    %124 = vmatmul.f32.gmra.mxu0 %v28
    %v125 = vpop.f32.mrf.mxu0
    %v126 = vadd.f32 %v65, %v125
    %127 = vmatmul.f32.gmra.mxu0 %v29
    %v128 = vpop.f32.mrf.mxu0
    %v129 = vadd.f32 %v65, %v128
    %130 = vmatmul.f32.gmra.mxu0 %v30
    %v131 = vpop.f32.mrf.mxu0
    %v132 = vadd.f32 %v65, %v131
    %133 = vdwg.mxu0
    %134 = vmatpush.msra.mxu0 %v62
    %135 = vmatpush.msra.mxu0 %v60
    %136 = vmatpush.msra.mxu0 %v58
    %137 = vmatpush.msra.mxu0 %v56
    %138 = vmatpush.msra.mxu0 %v54
    %139 = vmatpush.msra.mxu0 %v52
    %140 = vmatpush.msra.mxu0 %v50
    %141 = vmatpush.msra.mxu0 %v48
    %142 = vmatpush.msra.mxu0 %v46
    %143 = vmatpush.msra.mxu0 %v44
    %144 = vmatpush.msra.mxu0 %v42
    %145 = vmatpush.msra.mxu0 %v40
    %146 = vmatpush.msra.mxu0 %v38
    %147 = vmatpush.msra.mxu0 %v36
    %148 = vmatpush.msra.mxu0 %v34
    %149 = vmatpush.msra.mxu0 %v32
    %150 = vmatmul.f32.gmra.mxu0 %v15
    %v151 = vpop.f32.mrf.mxu0
    %v152 = vadd.f32 %v66, %v151
    %153 = vmatmul.f32.gmra.mxu0 %v16
    %v154 = vpop.f32.mrf.mxu0
    %v155 = vadd.f32 %v66, %v154
    %156 = vmatmul.f32.gmra.mxu0 %v17
    %v157 = vpop.f32.mrf.mxu0
    %v158 = vadd.f32 %v66, %v157
    %159 = vmatmul.f32.gmra.mxu0 %v18
    %v160 = vpop.f32.mrf.mxu0
    %v161 = vadd.f32 %v66, %v160
    %162 = vmatmul.f32.gmra.mxu0 %v19
    %v163 = vpop.f32.mrf.mxu0
    %v164 = vadd.f32 %v66, %v163
    %165 = vmatmul.f32.gmra.mxu0 %v20
    %v166 = vpop.f32.mrf.mxu0
    %v167 = vadd.f32 %v66, %v166
    %168 = vmatmul.f32.gmra.mxu0 %v21
    %v169 = vpop.f32.mrf.mxu0
    %v170 = vadd.f32 %v66, %v169
    %171 = vmatmul.f32.gmra.mxu0 %v22
    %v172 = vpop.f32.mrf.mxu0
    %v173 = vadd.f32 %v66, %v172
    %174 = vmatmul.f32.gmra.mxu0 %v23
    %v175 = vpop.f32.mrf.mxu0
    %v176 = vadd.f32 %v66, %v175
    %177 = vmatmul.f32.gmra.mxu0 %v24
    %v178 = vpop.f32.mrf.mxu0
    %v179 = vadd.f32 %v66, %v178
    %180 = vmatmul.f32.gmra.mxu0 %v25
    %v181 = vpop.f32.mrf.mxu0
    %v182 = vadd.f32 %v66, %v181
    %183 = vmatmul.f32.gmra.mxu0 %v26
    %v184 = vpop.f32.mrf.mxu0
    %v185 = vadd.f32 %v66, %v184
    %186 = vmatmul.f32.gmra.mxu0 %v27
    %v187 = vpop.f32.mrf.mxu0
    %v188 = vadd.f32 %v66, %v187
    %189 = vmatmul.f32.gmra.mxu0 %v28
    %v190 = vpop.f32.mrf.mxu0
    %v191 = vadd.f32 %v66, %v190
    %192 = vmatmul.f32.gmra.mxu0 %v29
    %v193 = vpop.f32.mrf.mxu0
    %v194 = vadd.f32 %v66, %v193
    %195 = vmatmul.f32.gmra.mxu0 %v30
    %v196 = vpop.f32.mrf.mxu0
    %v197 = vadd.f32 %v66, %v196
    %198 = vdwg.mxu0
    %199 = vst [vmem:[#allocation2] sm:$0xff] %v87
    %200 = vst [vmem:[#allocation2 + $0x8] sm:$0xff] %v152
    %201 = vst [vmem:[#allocation2 + $0x10] sm:$0xff] %v90
    %202 = vst [vmem:[#allocation2 + $0x18] sm:$0xff] %v155
    %203 = vst [vmem:[#allocation2 + $0x20] sm:$0xff] %v93
    %204 = vst [vmem:[#allocation2 + $0x28] sm:$0xff] %v158
    %205 = vst [vmem:[#allocation2 + $0x30] sm:$0xff] %v96
    %206 = vst [vmem:[#allocation2 + $0x38] sm:$0xff] %v161
    %207 = vst [vmem:[#allocation2 + $0x40] sm:$0xff] %v99
    %208 = vst [vmem:[#allocation2 + $0x48] sm:$0xff] %v164
    %209 = vst [vmem:[#allocation2 + $0x50] sm:$0xff] %v102
    %210 = vst [vmem:[#allocation2 + $0x58] sm:$0xff] %v167
    %211 = vst [vmem:[#allocation2 + $0x60] sm:$0xff] %v105
    %212 = vst [vmem:[#allocation2 + $0x68] sm:$0xff] %v170
    %213 = vst [vmem:[#allocation2 + $0x70] sm:$0xff] %v108
    %214 = vst [vmem:[#allocation2 + $0x78] sm:$0xff] %v173
    %215 = vst [vmem:[#allocation2 + $0x80] sm:$0xff] %v111
    %216 = vst [vmem:[#allocation2 + $0x88] sm:$0xff] %v176
    %217 = vst [vmem:[#allocation2 + $0x90] sm:$0xff] %v114
    %218 = vst [vmem:[#allocation2 + $0x98] sm:$0xff] %v179
    %219 = vst [vmem:[#allocation2 + $0xa0] sm:$0xff] %v117
    %220 = vst [vmem:[#allocation2 + $0xa8] sm:$0xff] %v182
    %221 = vst [vmem:[#allocation2 + $0xb0] sm:$0xff] %v120
    %222 = vst [vmem:[#allocation2 + $0xb8] sm:$0xff] %v185
    %223 = vst [vmem:[#allocation2 + $0xc0] sm:$0xff] %v123
    %224 = vst [vmem:[#allocation2 + $0xc8] sm:$0xff] %v188
    %225 = vst [vmem:[#allocation2 + $0xd0] sm:$0xff] %v126
    %226 = vst [vmem:[#allocation2 + $0xd8] sm:$0xff] %v191
    %227 = vst [vmem:[#allocation2 + $0xe0] sm:$0xff] %v129
    %228 = vst [vmem:[#allocation2 + $0xe8] sm:$0xff] %v194
    %229 = vst [vmem:[#allocation2 + $0xf0] sm:$0xff] %v132
    %230 = vst [vmem:[#allocation2 + $0xf8] sm:$0xff] %v197
    // Predicated region
    $region14: #{cnn_lm_forward.5} parent=1 // pred_check
      _
    $region15: #{cnn_lm_forward.5} parent=1 // pred_check_branch
      %232 = sbr.rel (0) target = $region17
    $region16: #{cnn_lm_forward.5} parent=1 // pred_region
      %234 = vsyncadd [#allocation3], 0
      %s235 = sshll.u32 [#allocation2], 4
      %s236 = int_to_ptr.vmem [resolvable:$true] %s235
      %s237 = sshll.u32 %s3, 4
      %s238 = int_to_ptr.hbm [resolvable:$true] %s237
      %243 = dma.vmem_to_hbm [thread:$0]  %s236, 4096, %s238, [#allocation3], 256, 256, 16
    $region17: #{cnn_lm_forward.5} parent=1 // pred_fallthru
      _
    // Predicated region
    $region18: #{cnn_lm_forward.5} parent=1 // pred_check
      _
    $region19: #{cnn_lm_forward.5} parent=1 // pred_check_branch
      %245 = sbr.rel (0) target = $region21
    $region20: #{cnn_lm_forward.5} parent=1 // pred_region
      %247 = dma.done [#allocation3], 4096
    $region21: #{cnn_lm_forward.5} parent=1 // pred_fallthru
      _
    %248 = vsyncpa [#allocation3], 1

</llo_original>
